<compile_context>
chip_gen: v6e
topology: v6e:2x2x1
jax: 0.10.0
libtpu: 0.0.40
codegen_flags: <defaults>
</compile_context>

<pallas_src>
import functools
import math

import jax
import jax.numpy as jnp
import numpy as np
from jax.experimental import pallas as pl
from jax.experimental.pallas import tpu as pltpu


# ---------------------------------------------------------------------------
# One-time probe: which way does pltpu.roll rotate on this backend?
# Returns +1 if pltpu.roll matches jnp.roll (out[i] = x[i - shift]),
# -1 for the opposite rotation, 0 if the probe could not run (the main kernel
# then uses a reshape-based softmax fallback).
# ---------------------------------------------------------------------------
@functools.lru_cache(maxsize=None)
def _pltpu_roll_sign():
    def probe(x_ref, o_ref):
        o_ref[...] = pltpu.roll(x_ref[...], 1, axis=1)

    try:
        x = jnp.tile(jnp.arange(128, dtype=jnp.float32)[None, :], (8, 1))
        out = pl.pallas_call(
            probe, out_shape=jax.ShapeDtypeStruct((8, 128), jnp.float32)
        )(x)
        first = float(jax.device_get(out)[0, 0])
        if first == 127.0:
            return 1
        if first == 1.0:
            return -1
        return 0
    except Exception:  # conservative: fall back to reshape softmax
        return 0


def _dueling_kernel(x_ref, w1_ref, b1_ref, wphi_ref, bphi_ref, jrow_ref,
                    out_ref, *, nb_atoms, n_out, roll_sign):
    """relu(linear) -> single fused dueling-head matmul -> lane-dense softmax."""
    atoms = nb_atoms
    tb = x_ref.shape[0]
    n_pad = wphi_ref.shape[1]          # padded lane width (multiple of 128)

    # ---- layer 1 + ReLU (MXU + VPU) ---------------------------------------
    h = jnp.maximum(
        jnp.dot(x_ref[...], w1_ref[...], preferred_element_type=jnp.float32)
        + b1_ref[...],
        0.0,
    )                                                          # (tb, hidden) f32

    # ---- fused value/advantage/dueling head: ONE matmul --------------------
    phi = (
        jnp.dot(h.astype(wphi_ref.dtype), wphi_ref[...],
                preferred_element_type=jnp.float32)
        + bphi_ref[...]
    )                                                          # (tb, n_pad) f32

    if roll_sign != 0:
        # ---- lane-dense segmented softmax over each `atoms`-wide group -----
        # j[i] = lane position within its atoms-segment (host-precomputed row).
        j = jnp.broadcast_to(jrow_ref[...], phi.shape)         # (tb, n_pad) i32

        def up(v, s):      # up(v, s)[i] == v[i + s]   (cyclic over n_pad lanes)
            return pltpu.roll(v, (-s * roll_sign) % n_pad, axis=1)

        def down(v, s):    # down(v, s)[i] == v[i - s]
            return pltpu.roll(v, (s * roll_sign) % n_pad, axis=1)

        # precompute the lane masks once; reused by max and sum reductions
        steps = []
        s = 1
        while s < atoms:
            steps.append((s, j + s < atoms, j >= s))
            s *= 2
        head = j == 0

        neg_inf = jnp.float32(-jnp.inf)

        # segmented max: suffix reduce to segment head, then broadcast back
        m = phi
        for s, up_ok, _ in steps:
            m = jnp.where(up_ok, jnp.maximum(m, up(m, s)), m)
        m = jnp.where(head, m, neg_inf)
        for s, _, down_ok in steps:
            m = jnp.where(down_ok, jnp.maximum(m, down(m, s)), m)

        e = jnp.exp(phi - m)                                   # dense EUP work

        # segmented sum (exact, disjoint windows), then broadcast back
        d = e
        for s, up_ok, _ in steps:
            d = jnp.where(up_ok, d + up(d, s), d)
        d = jnp.where(head, d, 0.0)
        for s, _, down_ok in steps:
            d = jnp.where(down_ok, jnp.maximum(d, down(d, s)), d)

        sm = e * pl.reciprocal(d, approx=False)                # exact normalize
        if n_pad != n_out:
            sm = sm[:, :n_out]                                 # drop pad lanes
        out_ref[...] = sm.astype(out_ref.dtype)
    else:
        # Fallback (no usable roll): reshape-based softmax (previously clean).
        num_action = n_out // atoms
        p = phi if n_pad == n_out else phi[:, :n_out]
        p3 = p.reshape(tb, num_action, atoms)
        m3 = jnp.max(p3, axis=-1, keepdims=True)
        e3 = jnp.exp(p3 - m3)
        d3 = jnp.sum(e3, axis=-1, keepdims=True)
        sm = (e3 * pl.reciprocal(d3, approx=False)).reshape(tb, n_out)
        out_ref[...] = sm.astype(out_ref.dtype)


def _pick_block_b(B, ob, hidden, n_out, n_pad, requested):
    """VMEM-aware batch tile: biggest multiple-of-8 tile (<= requested) whose
    double-buffered x/out blocks + f32 temporaries stay well under the scoped
    VMEM default (also safe for v7x's smaller physical VMEM)."""
    bytes_per_row = 4 * (2 * ob + 2 * n_out + 2 * hidden + 8 * n_pad)
    budget = 20 * 1024 * 1024
    cap = max(8, min(int(requested), (budget // bytes_per_row) // 8 * 8))
    if B <= cap:
        return B                                  # single tile == full batch dim
    if B <= 2 * cap:
        half = (B + 1) // 2                       # two tiles -> both v7x cores
        return min(cap, ((half + 7) // 8) * 8)
    return cap


def noisy_dist_dueling_mlp(x, params, *, num_action, nb_atoms, block_b=1024,
                           use_bf16_matmul=False):
    """Forward pass of NoisyDistDuelingMLP as one Pallas kernel."""
    B, ob = x.shape
    hidden = params["w1"].shape[1]
    n_out = num_action * nb_atoms
    n_pad = max(128, ((n_out + 127) // 128) * 128)   # lane-dense internal width

    # ---- one-time, grid-invariant weight fold (O(hidden * n_out)) ----------
    # phi_j = value + adv_j - mean_k adv_k
    #       = h @ (wa_j + wv - mean_k wa_k) + (ba_j + bv - mean_k ba_k)
    wv = params["wv"] + params["sigma_wv"] * params["eps_wv"]       # (h, atoms)
    bv = params["bv"] + params["sigma_bv"] * params["eps_bv"]       # (atoms,)
    wa = params["wa"] + params["sigma_wa"] * params["eps_wa"]       # (h, n_out)
    ba = params["ba"] + params["sigma_ba"] * params["eps_ba"]       # (n_out,)
    wa3 = wa.reshape(hidden, num_action, nb_atoms)
    ba2 = ba.reshape(num_action, nb_atoms)
    w_phi = (wa3 + (wv - wa3.mean(axis=1))[:, None, :]).reshape(hidden, n_out)
    b_phi = (ba2 + (bv - ba2.mean(axis=0))[None, :]).reshape(1, n_out)
    if n_pad != n_out:                       # zero-pad lanes to a 128 multiple
        w_phi = jnp.pad(w_phi, ((0, 0), (0, n_pad - n_out)))
        b_phi = jnp.pad(b_phi, ((0, 0), (0, n_pad - n_out)))
    b1 = params["b1"].reshape(1, hidden)
    w1 = params["w1"]
    if use_bf16_matmul:                      # MXU fast path (v6e/v7x); f32 acc
        x = x.astype(jnp.bfloat16)
        w1 = w1.astype(jnp.bfloat16)
        w_phi = w_phi.astype(jnp.bfloat16)

    # host-precomputed lane-position row (avoids in-kernel int iota/mod)
    j_row = jnp.asarray(
        (np.arange(n_pad, dtype=np.int32) % np.int32(nb_atoms)).reshape(1, n_pad))

    # ---- batch tiling: ragged last block is masked by Pallas (no pad/slice) -
    tb = _pick_block_b(B, ob, hidden, n_out, n_pad, block_b)
    grid = (pl.cdiv(B, tb),)

    rep = lambda i: (0, 0)   # grid-constant blocks (Pallas skips their re-DMA)
    in_specs = [
        pl.BlockSpec((tb, ob), lambda i: (i, 0)),      # x: tiled over batch
        pl.BlockSpec((ob, hidden), rep),               # w1
        pl.BlockSpec((1, hidden), rep),                # b1
        pl.BlockSpec((hidden, n_pad), rep),            # folded dueling weights
        pl.BlockSpec((1, n_pad), rep),                 # folded dueling bias
        pl.BlockSpec((1, n_pad), rep),                 # lane % atoms row
    ]

    kernel = functools.partial(
        _dueling_kernel, nb_atoms=nb_atoms, n_out=n_out,
        roll_sign=_pltpu_roll_sign())

    out = pl.pallas_call(
        kernel,
        out_shape=jax.ShapeDtypeStruct((B, n_out), jnp.float32),
        grid=grid,
        in_specs=in_specs,
        out_specs=pl.BlockSpec((tb, n_out), lambda i: (i, 0)),
        compiler_params=pltpu.CompilerParams(
            dimension_semantics=("parallel",)),
    )(x, w1, b1, w_phi, b_phi, j_row)

    return out.reshape(B, num_action, nb_atoms)      # metadata-only reshape


def _init_params(key, ob_shape, num_action, nb_atoms, sigma_init):
    """Deterministic parameter init mirroring the PyTorch module shapes."""
    ks = jax.random.split(key, 6)
    hidden = 64
    bound1 = 1.0 / math.sqrt(ob_shape)
    w1 = jax.random.uniform(ks[0], (ob_shape, hidden), jnp.float32, -bound1, bound1)
    b1 = jax.random.uniform(ks[1], (hidden,), jnp.float32, -bound1, bound1)
    bound_n = math.sqrt(3.0 / hidden)
    wv = jax.random.uniform(ks[2], (hidden, nb_atoms), jnp.float32, -bound_n, bound_n)
    bv = jax.random.uniform(ks[3], (nb_atoms,), jnp.float32, -bound_n, bound_n)
    out_a = num_action * nb_atoms
    wa = jax.random.uniform(ks[4], (hidden, out_a), jnp.float32, -bound_n, bound_n)
    ba = jax.random.uniform(ks[5], (out_a,), jnp.float32, -bound_n, bound_n)
    return {
        "w1": w1, "b1": b1,
        "wv": wv, "bv": bv,
        "sigma_wv": jnp.full((hidden, nb_atoms), sigma_init, jnp.float32),
        "sigma_bv": jnp.full((nb_atoms,), sigma_init, jnp.float32),
        "eps_wv": jnp.zeros((hidden, nb_atoms), jnp.float32),
        "eps_bv": jnp.zeros((nb_atoms,), jnp.float32),
        "wa": wa, "ba": ba,
        "sigma_wa": jnp.full((hidden, out_a), sigma_init, jnp.float32),
        "sigma_ba": jnp.full((out_a,), sigma_init, jnp.float32),
        "eps_wa": jnp.zeros((hidden, out_a), jnp.float32),
        "eps_ba": jnp.zeros((out_a,), jnp.float32),
    }


def _reference(x, params, num_action, nb_atoms):
    """Pure-JAX reference replicating the PyTorch forward."""
    h = jax.nn.relu(x @ params["w1"] + params["b1"])
    wv = params["wv"] + params["sigma_wv"] * params["eps_wv"]
    bv = params["bv"] + params["sigma_bv"] * params["eps_bv"]
    wa = params["wa"] + params["sigma_wa"] * params["eps_wa"]
    ba = params["ba"] + params["sigma_ba"] * params["eps_ba"]
    value = (h @ wv + bv)[:, None, :]                         # (B, 1, atoms)
    adv = (h @ wa + ba).reshape(-1, num_action, nb_atoms)     # (B, A, atoms)
    phi = value + (adv - adv.mean(axis=1, keepdims=True))
    return jax.nn.softmax(phi, axis=-1)


if __name__ == "__main__":
    B, ob_shape, num_action, nb_atoms = 4, 32, 4, 8
    sigma_init = 0.017

    _pltpu_roll_sign()   # prime the roll-direction probe outside of jit

    key = jax.random.PRNGKey(0)
    k_x, k_p, k_n = jax.random.split(key, 3)
    x = jax.random.normal(k_x, (B, ob_shape), jnp.float32)
    params = _init_params(k_p, ob_shape, num_action, nb_atoms, sigma_init)

    # exercise the noisy path (equivalent of sample_noise(): nonzero epsilon)
    kn = jax.random.split(k_n, 4)
    params["eps_wv"] = jax.random.normal(kn[0], params["eps_wv"].shape, jnp.float32)
    params["eps_bv"] = jax.random.normal(kn[1], params["eps_bv"].shape, jnp.float32)
    params["eps_wa"] = jax.random.normal(kn[2], params["eps_wa"].shape, jnp.float32)
    params["eps_ba"] = jax.random.normal(kn[3], params["eps_ba"].shape, jnp.float32)

    fwd = jax.jit(functools.partial(
        noisy_dist_dueling_mlp, num_action=num_action, nb_atoms=nb_atoms))
    out = jax.block_until_ready(fwd(x, params))

    ref = _reference(x, params, num_action, nb_atoms)
    assert out.shape == (B, num_action, nb_atoms)
    assert bool(jnp.all(jnp.isfinite(out)))
    assert jnp.allclose(out, ref, atol=1e-4, rtol=1e-4), "mismatch vs reference"

    print("KERNEL_OK")
</pallas_src>

<mosaic_0001>
module attributes {stable_mosaic.version = 11 : i64} {
  func.func @probe(%arg0: memref<8x128xf32, #tpu.memory_space<vmem>>, %arg1: memref<8x128xf32, #tpu.memory_space<vmem>>) attributes {dimension_semantics = [], scalar_prefetch = 0 : i64, scratch_operands = 0 : i64, tpu.core_type = #tpu.core_type<tc>} {
    %c0 = arith.constant 0 : index
    %c0_0 = arith.constant 0 : index
    %0 = vector.load %arg0[%c0, %c0_0] : memref<8x128xf32, #tpu.memory_space<vmem>>, vector<8x128xf32>
    %c1_i32 = arith.constant 1 : i32
    %1 = tpu.dynamic_rotate %0 by %c1_i32 dim 1 : vector<8x128xf32>, i32 -> vector<8x128xf32>
    %c0_1 = arith.constant 0 : index
    %c0_2 = arith.constant 0 : index
    %2 = vector.load %arg1[%c0_1, %c0_2] : memref<8x128xf32, #tpu.memory_space<vmem>>, vector<8x128xf32>
    tpu.vector_store %arg1[%c0_1, %c0_2], %1 {strides = array<i32>} : memref<8x128xf32, #tpu.memory_space<vmem>>, vector<8x128xf32>,
    return
  }
}

module attributes {stable_mosaic.version = 11 : i64} {
  func.func @_dueling_kernel(%arg0: i32, %arg1: memref<4x32xf32, #tpu.memory_space<vmem>>, %arg2: memref<32x64xf32, #tpu.memory_space<vmem>>, %arg3: memref<1x64xf32, #tpu.memory_space<vmem>>, %arg4: memref<64x128xf32, #tpu.memory_space<vmem>>, %arg5: memref<1x128xf32, #tpu.memory_space<vmem>>, %arg6: memref<1x128xi32, #tpu.memory_space<vmem>>, %arg7: memref<4x32xf32, #tpu.memory_space<vmem>>) attributes {dimension_semantics = [#tpu.dimension_semantics<parallel>], iteration_bounds = array<i64: 1>, scalar_prefetch = 0 : i64, scratch_operands = 0 : i64, tpu.core_type = #tpu.core_type<tc>, window_params = [{transform_indices = @transform_0, window_bounds = array<i64: 4, 32>}, {pipeline_mode = #tpu.pipeline_mode<synchronous>, transform_indices = @transform_1, window_bounds = array<i64: 32, 64>}, {pipeline_mode = #tpu.pipeline_mode<synchronous>, transform_indices = @transform_2, window_bounds = array<i64: 1, 64>}, {pipeline_mode = #tpu.pipeline_mode<synchronous>, transform_indices = @transform_3, window_bounds = array<i64: 64, 128>}, {pipeline_mode = #tpu.pipeline_mode<synchronous>, transform_indices = @transform_4, window_bounds = array<i64: 1, 128>}, {pipeline_mode = #tpu.pipeline_mode<synchronous>, transform_indices = @transform_5, window_bounds = array<i64: 1, 128>}, {transform_indices = @transform_6, window_bounds = array<i64: 4, 32>}]} {
    %c0 = arith.constant 0 : index
    %c0_0 = arith.constant 0 : index
    %0 = vector.load %arg1[%c0, %c0_0] : memref<4x32xf32, #tpu.memory_space<vmem>>, vector<4x32xf32>
    %c0_1 = arith.constant 0 : index
    %c0_2 = arith.constant 0 : index
    %1 = vector.load %arg2[%c0_1, %c0_2] : memref<32x64xf32, #tpu.memory_space<vmem>>, vector<32x64xf32>
    %cst = arith.constant dense<0.000000e+00> : vector<4x64xf32>
    %2 = tpu.matmul %0, %1, %cst {dimension_numbers = #tpu.dot_dimension_numbers<[1], [0], [0], [1], [0, 0, 1, 1], [], []>} : vector<4x32xf32>, vector<32x64xf32>, vector<4x64xf32> -> vector<4x64xf32>
    %c0_3 = arith.constant 0 : index
    %c0_4 = arith.constant 0 : index
    %3 = vector.load %arg3[%c0_3, %c0_4] : memref<1x64xf32, #tpu.memory_space<vmem>>, vector<1x64xf32>
    %4 = vector.broadcast %3 : vector<1x64xf32> to vector<4x64xf32>
    %5 = arith.addf %2, %4 : vector<4x64xf32>
    %cst_5 = arith.constant 0.000000e+00 : f32
    %6 = vector.broadcast %cst_5 : f32 to vector<4x64xf32>
    %7 = arith.maximumf %5, %6 : vector<4x64xf32>
    %c0_6 = arith.constant 0 : index
    %c0_7 = arith.constant 0 : index
    %8 = vector.load %arg4[%c0_6, %c0_7] : memref<64x128xf32, #tpu.memory_space<vmem>>, vector<64x128xf32>
    %cst_8 = arith.constant dense<0.000000e+00> : vector<4x128xf32>
    %9 = tpu.matmul %7, %8, %cst_8 {dimension_numbers = #tpu.dot_dimension_numbers<[1], [0], [0], [1], [0, 0, 1, 1], [], []>} : vector<4x64xf32>, vector<64x128xf32>, vector<4x128xf32> -> vector<4x128xf32>
    %c0_9 = arith.constant 0 : index
    %c0_10 = arith.constant 0 : index
    %10 = vector.load %arg5[%c0_9, %c0_10] : memref<1x128xf32, #tpu.memory_space<vmem>>, vector<1x128xf32>
    %11 = vector.broadcast %10 : vector<1x128xf32> to vector<4x128xf32>
    %12 = arith.addf %9, %11 : vector<4x128xf32>
    %13 = vector.extract_strided_slice %12 {offsets = [0, 0], sizes = [4, 32], strides = [1, 1]} : vector<4x128xf32> to vector<4x32xf32>
    %14 = vector.shape_cast %13 : vector<4x32xf32> to vector<4x4x8xf32>
    %cst_11 = arith.constant dense<0xFF800000> : vector<4x4xf32>
    %15 = vector.multi_reduction <maximumf>, %14, %cst_11 [2] : vector<4x4x8xf32> to vector<4x4xf32>
    %16 = vector.shape_cast %15 : vector<4x4xf32> to vector<4x4x1xf32>
    %17 = vector.broadcast %16 : vector<4x4x1xf32> to vector<4x4x8xf32>
    %18 = arith.subf %14, %17 : vector<4x4x8xf32>
    %19 = math.exp %18 : vector<4x4x8xf32>
    %cst_12 = arith.constant dense<0.000000e+00> : vector<4x4xf32>
    %20 = vector.multi_reduction <add>, %19, %cst_12 [2] : vector<4x4x8xf32> to vector<4x4xf32>
    %21 = vector.shape_cast %20 : vector<4x4xf32> to vector<4x4x1xf32>
    %22 = tpu.reciprocal %21 : vector<4x4x1xf32> -> vector<4x4x1xf32>
    %23 = vector.broadcast %22 : vector<4x4x1xf32> to vector<4x4x8xf32>
    %24 = arith.mulf %19, %23 : vector<4x4x8xf32>
    %25 = vector.shape_cast %24 : vector<4x4x8xf32> to vector<4x32xf32>
    %c0_13 = arith.constant 0 : index
    %c0_14 = arith.constant 0 : index
    %26 = vector.load %arg7[%c0_13, %c0_14] : memref<4x32xf32, #tpu.memory_space<vmem>>, vector<4x32xf32>
    tpu.vector_store %arg7[%c0_13, %c0_14], %25 {strides = array<i32>} : memref<4x32xf32, #tpu.memory_space<vmem>>, vector<4x32xf32>,
    return
  }
  func.func @transform_0(%arg0: i32) -> (i32, i32) {
    %c0_i32 = arith.constant 0 : i32
    %c0_i32_0 = arith.constant 0 : i32
    return %arg0, %c0_i32 : i32, i32
  }
  func.func @transform_1(%arg0: i32) -> (i32, i32) {
    %c0_i32 = arith.constant 0 : i32
    %c0_i32_0 = arith.constant 0 : i32
    %c0_i32_1 = arith.constant 0 : i32
    return %c0_i32, %c0_i32_0 : i32, i32
  }
  func.func @transform_2(%arg0: i32) -> (i32, i32) {
    %c0_i32 = arith.constant 0 : i32
    %c0_i32_0 = arith.constant 0 : i32
    %c0_i32_1 = arith.constant 0 : i32
    return %c0_i32, %c0_i32_0 : i32, i32
  }
  func.func @transform_3(%arg0: i32) -> (i32, i32) {
    %c0_i32 = arith.constant 0 : i32
    %c0_i32_0 = arith.constant 0 : i32
    %c0_i32_1 = arith.constant 0 : i32
    return %c0_i32, %c0_i32_0 : i32, i32
  }
  func.func @transform_4(%arg0: i32) -> (i32, i32) {
    %c0_i32 = arith.constant 0 : i32
    %c0_i32_0 = arith.constant 0 : i32
    %c0_i32_1 = arith.constant 0 : i32
    return %c0_i32, %c0_i32_0 : i32, i32
  }
  func.func @transform_5(%arg0: i32) -> (i32, i32) {
    %c0_i32 = arith.constant 0 : i32
    %c0_i32_0 = arith.constant 0 : i32
    %c0_i32_1 = arith.constant 0 : i32
    return %c0_i32, %c0_i32_0 : i32, i32
  }
  func.func @transform_6(%arg0: i32) -> (i32, i32) {
    %c0_i32 = arith.constant 0 : i32
    %c0_i32_0 = arith.constant 0 : i32
    return %arg0, %c0_i32 : i32, i32
  }
}

</mosaic_0001>

<llo_original>
// kernel: tpu_custom_call.1
$region0: #{tpu_custom_call.1}
  #allocation0 [shape = 'u32[]', space=smem, size = 0x4, offset = 0x4, fixed_abs, tag = 'smem constant byte address 0x4 - core index']
  #allocation1 [shape = 'u32[144,128]{1,0:T(1,128)}', space=vmem, size = 0x12000, scoped, tag = 'internal scratch']
  %s0 = inlined_call_operand.hbm [shape: f32[8,128], index: 0, kind: input, shape index: {}]
  %s1 = inlined_call_operand.hbm [shape: f32[8,128], index: 1, kind: output, shape index: {}]
  %s2 = sld [smem:[#allocation0]]
  $region18: #{tpu_custom_call.1} parent=0
    _
  %s4 = ssub.s32 1, %s2
  %s5 = scalar_select 0, %s4, %s2
  $region1: #{tpu_custom_call.1} parent=0
    #allocation2 [shape = 'u8[4096]{0}', space=vmem, size = 0x1000, scoped, tag = 'input window, operand 0, single buffered']
    #allocation3 [shape = 's32[1]{0}', space=sflag, size = 0x4, scoped, tag = 'scoped memory for tpu_custom_call.1']
    #allocation4 [shape = 's32[1]{0}', space=sflag, size = 0x4, scoped, tag = 'scoped memory for tpu_custom_call.1']
    #allocation5 [shape = 'u8[4096]{0}', space=vmem, size = 0x1000, scoped, tag = 'output window, operand 0, single buffered']
    %6 = vsyncpa [#allocation3], 0
    %7 = vsyncpa [#allocation4], 0
    // Predicated region
    $region2: #{tpu_custom_call.1} parent=1 // pred_check
      _
    $region3: #{tpu_custom_call.1} parent=1 // pred_check_branch
      %9 = sbr.rel (0) target = $region5
    $region4: #{tpu_custom_call.1} parent=1 // pred_region
      %s11 = ssub.s32 128, 128
      %12 = vsyncadd [#allocation3], %s11
      %s14 = sshll.u32 [#allocation2], 4
      %s15 = int_to_ptr.vmem [resolvable:$true] %s14
      %17 = dma.hbm_to_vmem [thread:$0]  %s0, 128, %s15, [#allocation3]
    $region5: #{tpu_custom_call.1} parent=1 // pred_fallthru
      _
    // Predicated region
    $region6: #{tpu_custom_call.1} parent=1 // pred_check
      _
    $region7: #{tpu_custom_call.1} parent=1 // pred_check_branch
      %19 = sbr.rel (0) target = $region9
    $region8: #{tpu_custom_call.1} parent=1 // pred_region
      %20 = dma.done [#allocation3], 128
    $region9: #{tpu_custom_call.1} parent=1 // pred_fallthru
      _
    %v21 = vld [vmem:[#allocation2] sm:$0xff]
    %22 = vrot.lane.b32.xlu0 %v21, 1
    %v23 = vpop.permute.xlu0 %22
    %24 = vst [vmem:[#allocation5] sm:$0xff] %v23
    // Predicated region
    $region10: #{tpu_custom_call.1} parent=1 // pred_check
      _
    $region11: #{tpu_custom_call.1} parent=1 // pred_check_branch
      %26 = sbr.rel (0) target = $region13
    $region12: #{tpu_custom_call.1} parent=1 // pred_region
      %s28 = ssub.s32 128, 128
      %29 = vsyncadd [#allocation4], %s28
      %s31 = sshll.u32 [#allocation5], 4
      %s32 = int_to_ptr.vmem [resolvable:$true] %s31
      %34 = dma.vmem_to_hbm [thread:$0]  %s32, 128, %s1, [#allocation4]
    $region13: #{tpu_custom_call.1} parent=1 // pred_fallthru
      _
    // Predicated region
    $region14: #{tpu_custom_call.1} parent=1 // pred_check
      _
    $region15: #{tpu_custom_call.1} parent=1 // pred_check_branch
      %36 = sbr.rel (0) target = $region17
    $region16: #{tpu_custom_call.1} parent=1 // pred_region
      %37 = dma.done [#allocation4], 128
    $region17: #{tpu_custom_call.1} parent=1 // pred_fallthru
      _
    %38 = vsyncpa [#allocation3], 1
    %39 = vsyncpa [#allocation4], 1

// kernel: mul.6
$region0: #{mul.6}
  #allocation4 [shape = 's32[1]{0}', space=sflag, size = 0x4, scoped, tag = 'scoped memory for mul.6']
  %s0 = inlined_call_operand.hbm [shape: f32[64,32], index: 0, kind: input, shape index: {}]
  %s1 = inlined_call_operand.hbm [shape: f32[64,32], index: 1, kind: input, shape index: {}]
  %s2 = inlined_call_operand.vmem [shape: f32[64,32], index: 2, kind: output, shape index: {}]
  $region1: #{mul.6} parent=0
    #allocation0 [shape = 'u8[16384]{0}', space=vmem, size = 0x4000, scoped, tag = 'operand span for operand 0']
    #allocation1 [shape = 's32[1]{0}', space=sflag, size = 0x4, scoped, tag = 'scoped memory for mul.6']
    #allocation2 [shape = 'u8[16384]{0}', space=vmem, size = 0x4000, scoped, tag = 'operand span for operand 1']
    #allocation3 [shape = 's32[1]{0}', space=sflag, size = 0x4, scoped, tag = 'scoped memory for mul.6']
    %3 = vsyncpa [#allocation1], 0
    %4 = vsyncpa [#allocation3], 0
    %s6 = ssub.s32 512, 512
    %7 = vsyncadd [#allocation1], %s6
    %s8 = sshll.u32 [#allocation0], 4
    %s9 = int_to_ptr.vmem [resolvable:$true] %s8
    %14 = dma.hbm_to_vmem [thread:$0]  %s0, 512, %s9, [#allocation1], 128, 128, 8
    %s16 = ssub.s32 512, 512
    %17 = vsyncadd [#allocation3], %s16
    %s18 = sshll.u32 [#allocation2], 4
    %s19 = int_to_ptr.vmem [resolvable:$true] %s18
    %24 = dma.hbm_to_vmem [thread:$0]  %s1, 512, %s19, [#allocation3], 128, 128, 8
    %25 = dma.done [#allocation1], 512
    %26 = dma.done [#allocation3], 512
    %v27 = vld [vmem:[#allocation0] sm:$0xff]
    %v28 = vld [vmem:[#allocation2] sm:$0xff]
    %29 = xla_tuple %v27, %v28
    %30 = xla_tuple %29
    %v31 = vmul.f32 %v27, %v28
    %32 = xla_tuple %v31
    %33 = vst [vmem:[%s2] sm:$0xff] %v31
    %s34 = scalar_lea.vmem [#allocation0], 8
    %v35 = vld [vmem:[%s34] sm:$0xff]
    %s36 = scalar_lea.vmem [#allocation2], 8
    %v37 = vld [vmem:[%s36] sm:$0xff]
    %38 = xla_tuple %v35, %v37
    %39 = xla_tuple %38
    %v40 = vmul.f32 %v35, %v37
    %41 = xla_tuple %v40
    %s42 = scalar_lea.vmem %s2, 8
    %43 = vst [vmem:[%s42] sm:$0xff] %v40
    %s44 = scalar_lea.vmem [#allocation0], 16
    %v45 = vld [vmem:[%s44] sm:$0xff]
    %s46 = scalar_lea.vmem [#allocation2], 16
    %v47 = vld [vmem:[%s46] sm:$0xff]
    %48 = xla_tuple %v45, %v47
    %49 = xla_tuple %48
    %v50 = vmul.f32 %v45, %v47
    %51 = xla_tuple %v50
    %s52 = scalar_lea.vmem %s2, 16
    %53 = vst [vmem:[%s52] sm:$0xff] %v50
    %s54 = scalar_lea.vmem [#allocation0], 24
    %v55 = vld [vmem:[%s54] sm:$0xff]
    %s56 = scalar_lea.vmem [#allocation2], 24
    %v57 = vld [vmem:[%s56] sm:$0xff]
    %58 = xla_tuple %v55, %v57
    %59 = xla_tuple %58
    %v60 = vmul.f32 %v55, %v57
    %61 = xla_tuple %v60
    %s62 = scalar_lea.vmem %s2, 24
    %63 = vst [vmem:[%s62] sm:$0xff] %v60
    %64 = vsyncpa [#allocation1], 1
    %65 = vsyncpa [#allocation3], 1

// kernel: noisy_dist_dueling_mlp.1
$region0: #{noisy_dist_dueling_mlp.1}
  #allocation0 [shape = 'u32[]', space=smem, size = 0x4, offset = 0x4, fixed_abs, tag = 'smem constant byte address 0x4 - core index']
  #allocation1 [shape = 'u32[144,128]{1,0:T(1,128)}', space=vmem, size = 0x12000, scoped, tag = 'internal scratch']
  %s0 = inlined_call_operand.vmem [shape: f32[4,32], index: 0, kind: input, shape index: {}]
  %s1 = inlined_call_operand.vmem [shape: f32[32,64], index: 1, kind: input, shape index: {}]
  %s2 = inlined_call_operand.vmem [shape: f32[1,64], index: 2, kind: input, shape index: {}]
  %s3 = inlined_call_operand.vmem [shape: f32[64,128], index: 3, kind: input, shape index: {}]
  %s4 = inlined_call_operand.vmem [shape: f32[1,128], index: 4, kind: input, shape index: {}]
  %s5 = inlined_call_operand.vmem [shape: s32[1,128], index: 5, kind: input, shape index: {}]
  %s6 = inlined_call_operand.vmem [shape: f32[4,32], index: 6, kind: output, shape index: {}]
  %s7 = sld [smem:[#allocation0]]
  $region34: #{noisy_dist_dueling_mlp.1} parent=0
    _
  %s9 = ssub.s32 1, %s7
  %s10 = scalar_select 0, %s9, %s7
  // Predicated region
  $region2: #{noisy_dist_dueling_mlp.1} parent=0 // pred_check
    _
  $region3: #{noisy_dist_dueling_mlp.1} parent=0 // pred_check_branch
    %12 = sbr.rel (0) target = $region5
  $region4: #{noisy_dist_dueling_mlp.1} parent=0 // pred_region
    _
  $region5: #{noisy_dist_dueling_mlp.1} parent=0 // pred_fallthru
    _
  // Predicated region
  $region6: #{noisy_dist_dueling_mlp.1} parent=0 // pred_check
    _
  $region7: #{noisy_dist_dueling_mlp.1} parent=0 // pred_check_branch
    %14 = sbr.rel (0) target = $region9
  $region8: #{noisy_dist_dueling_mlp.1} parent=0 // pred_region
    _
  $region9: #{noisy_dist_dueling_mlp.1} parent=0 // pred_fallthru
    _
  // Predicated region
  $region10: #{noisy_dist_dueling_mlp.1} parent=0 // pred_check
    _
  $region11: #{noisy_dist_dueling_mlp.1} parent=0 // pred_check_branch
    %16 = sbr.rel (0) target = $region13
  $region12: #{noisy_dist_dueling_mlp.1} parent=0 // pred_region
    _
  $region13: #{noisy_dist_dueling_mlp.1} parent=0 // pred_fallthru
    _
  // Predicated region
  $region14: #{noisy_dist_dueling_mlp.1} parent=0 // pred_check
    _
  $region15: #{noisy_dist_dueling_mlp.1} parent=0 // pred_check_branch
    %18 = sbr.rel (0) target = $region17
  $region16: #{noisy_dist_dueling_mlp.1} parent=0 // pred_region
    _
  $region17: #{noisy_dist_dueling_mlp.1} parent=0 // pred_fallthru
    _
  // Predicated region
  $region18: #{noisy_dist_dueling_mlp.1} parent=0 // pred_check
    _
  $region19: #{noisy_dist_dueling_mlp.1} parent=0 // pred_check_branch
    %20 = sbr.rel (0) target = $region21
  $region20: #{noisy_dist_dueling_mlp.1} parent=0 // pred_region
    _
  $region21: #{noisy_dist_dueling_mlp.1} parent=0 // pred_fallthru
    _
  // Predicated region
  $region22: #{noisy_dist_dueling_mlp.1} parent=0 // pred_check
    _
  $region23: #{noisy_dist_dueling_mlp.1} parent=0 // pred_check_branch
    %22 = sbr.rel (0) target = $region25
  $region24: #{noisy_dist_dueling_mlp.1} parent=0 // pred_region
    _
  $region25: #{noisy_dist_dueling_mlp.1} parent=0 // pred_fallthru
    _
  %v23 = vld [vmem:[%s0] sm:$0xf]
  %v24 = vld [vmem:[%s1] sm:$0xff]
  %v25 = vld [vmem:[%s1 + $0x8] sm:$0xff]
  %v26 = vld [vmem:[%s1 + $0x10] sm:$0xff]
  %v27 = vld [vmem:[%s1 + $0x18] sm:$0xff]
  %v28 = vld [vmem:[%s2] sm:$0x1]
  %v30 = vlaneseq
  %v31 = vshrl.u32 %v30, 7
  %v32 = vsub.s32 0, %v31
  %v33 = vrot.slane %v28, %v32
  %vm35 = vcmask 261120
  %v37 = vsel %vm35, %v23, 0
  %39 = vmatprep.subr.mxu0 0.0
  %40 = vmatpush1.msra.mxu0 0.0
  %41 = vmatprep.subr.mxu0 0.0
  %42 = vmatpush1.msra.mxu0 0.0
  %43 = vmatprep.subr.mxu0 0.0
  %44 = vmatpush1.msra.mxu0 0.0
  %45 = vmatprep.subr.mxu0 0.0
  %46 = vmatpush1.msra.mxu0 0.0
  %47 = vmatprep.subr.mxu0 0.0
  %48 = vmatpush1.msra.mxu0 0.0
  %49 = vmatprep.subr.mxu0 0.0
  %50 = vmatpush1.msra.mxu0 0.0
  %51 = vmatprep.subr.mxu0 0.0
  %52 = vmatpush1.msra.mxu0 0.0
  %53 = vmatprep.subr.mxu0 0.0
  %54 = vmatpush1.msra.mxu0 0.0
  %55 = vmatprep.subr.mxu0 0.0
  %56 = vmatpush1.msra.mxu0 0.0
  %57 = vmatprep.subr.mxu0 0.0
  %58 = vmatpush1.msra.mxu0 0.0
  %59 = vmatprep.subr.mxu0 0.0
  %60 = vmatpush1.msra.mxu0 0.0
  %61 = vmatprep.subr.mxu0 0.0
  %62 = vmatpush1.msra.mxu0 0.0
  %63 = vmatprep.subr.mxu0 0.0
  %64 = vmatpush1.msra.mxu0 %v27
  %65 = vmatprep.subr.mxu0 0.0
  %66 = vmatpush1.msra.mxu0 %v26
  %67 = vmatprep.subr.mxu0 0.0
  %68 = vmatpush1.msra.mxu0 %v25
  %69 = vmatprep.subr.mxu0 0.0
  %70 = vmatpush1.msra.mxu0 %v24
  %71 = vmatprep.subr.mxu0 0.0
  %72 = vmatpush2.msra.mxu0 0.0
  %73 = vmatprep.subr.mxu0 0.0
  %74 = vmatpush2.msra.mxu0 0.0
  %75 = vmatprep.subr.mxu0 0.0
  %76 = vmatpush2.msra.mxu0 0.0
  %77 = vmatprep.subr.mxu0 0.0
  %78 = vmatpush2.msra.mxu0 0.0
  %79 = vmatprep.subr.mxu0 0.0
  %80 = vmatpush2.msra.mxu0 0.0
  %81 = vmatprep.subr.mxu0 0.0
  %82 = vmatpush2.msra.mxu0 0.0
  %83 = vmatprep.subr.mxu0 0.0
  %84 = vmatpush2.msra.mxu0 0.0
  %85 = vmatprep.subr.mxu0 0.0
  %86 = vmatpush2.msra.mxu0 0.0
  %87 = vmatprep.subr.mxu0 0.0
  %88 = vmatpush2.msra.mxu0 0.0
  %89 = vmatprep.subr.mxu0 0.0
  %90 = vmatpush2.msra.mxu0 0.0
  %91 = vmatprep.subr.mxu0 0.0
  %92 = vmatpush2.msra.mxu0 0.0
  %93 = vmatprep.subr.mxu0 0.0
  %94 = vmatpush2.msra.mxu0 0.0
  %95 = vmatprep.subr.mxu0 0.0
  %96 = vmatpush2.msra.mxu0 0.0
  %97 = vmatprep.subr.mxu0 0.0
  %98 = vmatpush2.msra.mxu0 0.0
  %99 = vmatprep.subr.mxu0 0.0
  %100 = vmatpush2.msra.mxu0 0.0
  %101 = vmatprep.subr.mxu0 0.0
  %102 = vmatpush2.msra.mxu0 0.0
  %103 = vmatprep.mubr.f32.mxu0 0.0
  %104 = vmatmul.mubr.f32.gmra.mxu0 %v37
  %v105 = vpop.f32.mrf.mxu0
  %v106 = vadd.f32 %v33, %v105
  %v107 = vpop.f32.mrf.mxu0
  %108 = vdwg.mxu0
  %v109 = vmax.f32 %v106, 0.0
  %v110 = vld [vmem:[%s3] sm:$0xff]
  %v111 = vld [vmem:[%s3 + $0x8] sm:$0xff]
  %v112 = vld [vmem:[%s3 + $0x10] sm:$0xff]
  %v113 = vld [vmem:[%s3 + $0x18] sm:$0xff]
  %v114 = vld [vmem:[%s3 + $0x20] sm:$0xff]
  %v115 = vld [vmem:[%s3 + $0x28] sm:$0xff]
  %v116 = vld [vmem:[%s3 + $0x30] sm:$0xff]
  %v117 = vld [vmem:[%s3 + $0x38] sm:$0xff]
  %v118 = vld [vmem:[%s4] sm:$0x1]
  %v120 = vlaneseq
  %v121 = vshrl.u32 %v120, 7
  %v122 = vsub.s32 0, %v121
  %v123 = vrot.slane %v118, %v122
  %vm125 = vcmask 523264
  %v127 = vsel %vm125, %v109, 0
  %129 = vmatprep.subr.mxu0 0.0
  %130 = vmatpush1.msra.mxu0 0.0
  %131 = vmatprep.subr.mxu0 0.0
  %132 = vmatpush1.msra.mxu0 0.0
  %133 = vmatprep.subr.mxu0 0.0
  %134 = vmatpush1.msra.mxu0 0.0
  %135 = vmatprep.subr.mxu0 0.0
  %136 = vmatpush1.msra.mxu0 0.0
  %137 = vmatprep.subr.mxu0 0.0
  %138 = vmatpush1.msra.mxu0 0.0
  %139 = vmatprep.subr.mxu0 0.0
  %140 = vmatpush1.msra.mxu0 0.0
  %141 = vmatprep.subr.mxu0 0.0
  %142 = vmatpush1.msra.mxu0 0.0
  %143 = vmatprep.subr.mxu0 0.0
  %144 = vmatpush1.msra.mxu0 0.0
  %145 = vmatprep.subr.mxu0 0.0
  %146 = vmatpush1.msra.mxu0 %v117
  %147 = vmatprep.subr.mxu0 0.0
  %148 = vmatpush1.msra.mxu0 %v116
  %149 = vmatprep.subr.mxu0 0.0
  %150 = vmatpush1.msra.mxu0 %v115
  %151 = vmatprep.subr.mxu0 0.0
  %152 = vmatpush1.msra.mxu0 %v114
  %153 = vmatprep.subr.mxu0 0.0
  %154 = vmatpush1.msra.mxu0 %v113
  %155 = vmatprep.subr.mxu0 0.0
  %156 = vmatpush1.msra.mxu0 %v112
  %157 = vmatprep.subr.mxu0 0.0
  %158 = vmatpush1.msra.mxu0 %v111
  %159 = vmatprep.subr.mxu0 0.0
  %160 = vmatpush1.msra.mxu0 %v110
  %161 = vmatprep.subr.mxu0 0.0
  %162 = vmatpush2.msra.mxu0 0.0
  %163 = vmatprep.subr.mxu0 0.0
  %164 = vmatpush2.msra.mxu0 0.0
  %165 = vmatprep.subr.mxu0 0.0
  %166 = vmatpush2.msra.mxu0 0.0
  %167 = vmatprep.subr.mxu0 0.0
  %168 = vmatpush2.msra.mxu0 0.0
  %169 = vmatprep.subr.mxu0 0.0
  %170 = vmatpush2.msra.mxu0 0.0
  %171 = vmatprep.subr.mxu0 0.0
  %172 = vmatpush2.msra.mxu0 0.0
  %173 = vmatprep.subr.mxu0 0.0
  %174 = vmatpush2.msra.mxu0 0.0
  %175 = vmatprep.subr.mxu0 0.0
  %176 = vmatpush2.msra.mxu0 0.0
  %177 = vmatprep.subr.mxu0 0.0
  %178 = vmatpush2.msra.mxu0 0.0
  %179 = vmatprep.subr.mxu0 0.0
  %180 = vmatpush2.msra.mxu0 0.0
  %181 = vmatprep.subr.mxu0 0.0
  %182 = vmatpush2.msra.mxu0 0.0
  %183 = vmatprep.subr.mxu0 0.0
  %184 = vmatpush2.msra.mxu0 0.0
  %185 = vmatprep.subr.mxu0 0.0
  %186 = vmatpush2.msra.mxu0 0.0
  %187 = vmatprep.subr.mxu0 0.0
  %188 = vmatpush2.msra.mxu0 0.0
  %189 = vmatprep.subr.mxu0 0.0
  %190 = vmatpush2.msra.mxu0 0.0
  %191 = vmatprep.subr.mxu0 0.0
  %192 = vmatpush2.msra.mxu0 0.0
  %193 = vmatprep.mubr.f32.mxu0 0.0
  %194 = vmatmul.mubr.f32.gmra.mxu0 %v127
  %v195 = vpop.f32.mrf.mxu0
  %v196 = vadd.f32 %v123, %v195
  %v197 = vpop.f32.mrf.mxu0
  %198 = vdwg.mxu0
  %200 = vrot.lane.b32.xlu0 %v196, 120
  %v201 = vpop.permute.xlu0 %200
  %203 = vrot.lane.b32.xlu0 %v196, 112
  %v204 = vpop.permute.xlu0 %203
  %206 = vrot.lane.b32.xlu0 %v196, 104
  %v207 = vpop.permute.xlu0 %206
  %v209 = vcombine.low %v196, %v204
  %v211 = vunpack.c.l.s4 1983009808
  %v212 = vunpack.c.0.s8 %v211
  %v213 = vlaneseq
  %v214 = vshrl.u32 %v213, 7
  %v215 = vsub.s32 %v212, %v214
  %v216 = vrot.slane %v209, %v215
  %v217 = vcombine.low %v201, %v207
  %v219 = vunpack.c.l.s4 1983009808
  %v220 = vunpack.c.0.s8 %v219
  %v221 = vlaneseq
  %v222 = vshrl.u32 %v221, 7
  %v223 = vsub.s32 %v220, %v222
  %v224 = vrot.slane %v217, %v223
  %v225 = vcombine.low %v216, %v224
  %v226 = vcombine.high %v216, %v224
  %v228 = vunpack.c.l.s4 1934713408
  %v229 = vunpack.c.0.s8 %v228
  %v230 = vlaneseq
  %v231 = vshrl.u32 %v230, 7
  %v232 = vsub.s32 %v229, %v231
  %v233 = vrot.slane %v225, %v232
  %v235 = vunpack.c.l.s4 1934713408
  %v236 = vunpack.c.0.s8 %v235
  %v237 = vlaneseq
  %v238 = vshrl.u32 %v237, 7
  %v239 = vsub.s32 %v236, %v238
  %v240 = vrot.slane %v226, %v239
  %v241 = vcombine.high %v233, 0.0
  %v242 = vcombine.high %v240, 0.0
  %vm243 = vcmask 60416
  %v244 = vsel %vm243, %v233, -inf
  %245 = vmax.xlane.f32.xlu0 %v244
  %v246 = vpop.xlane.xlu0 %245
  %v247 = vsel %vm243, %v241, -inf
  %248 = vmax.xlane.f32.xlu0 %v247
  %v249 = vpop.xlane.xlu0 %248
  %v250 = vsel %vm243, %v240, -inf
  %251 = vmax.xlane.f32.xlu0 %v250
  %v252 = vpop.xlane.xlu0 %251
  %v253 = vsel %vm243, %v242, -inf
  %254 = vmax.xlane.f32.xlu0 %v253
  %v255 = vpop.xlane.xlu0 %254
  %v256 = vsub.f32 %v233, %v246
  %v257 = vsub.f32 %v241, %v249
  %v258 = vsub.f32 %v240, %v252
  %v259 = vsub.f32 %v242, %v255
  %v260 = vmul.f32 %v256, 1.442695
  %v261 = vpow.pop %v260
  %v262 = vmul.f32 %v257, 1.442695
  %v263 = vpow.pop %v262
  %v264 = vmul.f32 %v258, 1.442695
  %v265 = vpow.pop %v264
  %v266 = vmul.f32 %v259, 1.442695
  %v267 = vpow.pop %v266
  %v268 = vsel %vm243, %v261, 0.0
  %269 = vadd.xlane.f32.xlu0 %v268
  %v270 = vpop.xlane.xlu0 %269
  %v271 = vsel %vm243, %v263, 0.0
  %272 = vadd.xlane.f32.xlu0 %v271
  %v273 = vpop.xlane.xlu0 %272
  %v274 = vsel %vm243, %v265, 0.0
  %275 = vadd.xlane.f32.xlu0 %v274
  %v276 = vpop.xlane.xlu0 %275
  %v277 = vsel %vm243, %v267, 0.0
  %278 = vadd.xlane.f32.xlu0 %v277
  %v279 = vpop.xlane.xlu0 %278
  %v280 = vrcp.pop %v270
  %v281 = vrcp.pop %v273
  %v282 = vrcp.pop %v276
  %v283 = vrcp.pop %v279
  %v284 = vmul.f32 %v261, %v280
  %v285 = vmul.f32 %v263, %v281
  %v286 = vmul.f32 %v265, %v282
  %v287 = vmul.f32 %v267, %v283
  %v288 = vcombine.low %v284, %v286
  %v290 = vunpack.c.l.s4 1983009808
  %v291 = vunpack.c.0.s8 %v290
  %v292 = vlaneseq
  %v293 = vshrl.u32 %v292, 7
  %v294 = vsub.s32 %v291, %v293
  %v295 = vrot.slane %v288, %v294
  %v296 = vcombine.low %v285, %v287
  %v298 = vunpack.c.l.s4 1983009808
  %v299 = vunpack.c.0.s8 %v298
  %v300 = vlaneseq
  %v301 = vshrl.u32 %v300, 7
  %v302 = vsub.s32 %v299, %v301
  %v303 = vrot.slane %v296, %v302
  %v304 = vcombine.low %v295, %v303
  %v305 = vcombine.high %v295, %v303
  %v307 = vunpack.c.l.s4 1934713408
  %v308 = vunpack.c.0.s8 %v307
  %v309 = vlaneseq
  %v310 = vshrl.u32 %v309, 7
  %v311 = vsub.s32 %v308, %v310
  %v312 = vrot.slane %v304, %v311
  %v314 = vunpack.c.l.s4 1934713408
  %v315 = vunpack.c.0.s8 %v314
  %v316 = vlaneseq
  %v317 = vshrl.u32 %v316, 7
  %v318 = vsub.s32 %v315, %v317
  %v319 = vrot.slane %v305, %v318
  %v320 = vcombine.high %v312, 0.0
  %v321 = vcombine.high %v319, 0.0
  %323 = vrot.lane.b32.xlu0 %v320, 8
  %v324 = vpop.permute.xlu0 %323
  %327 = vrot.lane.b32.xlu0 %v319, 16
  %v328 = vpop.permute.xlu0 %327
  %331 = vrot.lane.b32.xlu0 %v321, 24
  %v332 = vpop.permute.xlu0 %331
  %vm334 = vcmask 64512
  %v335 = vsel %vm334, %v312, %v324
  %vm336 = vcmask 130048
  %v337 = vsel %vm336, %v335, %v328
  %vm338 = vcmask 195584
  %v339 = vsel %vm338, %v337, %v332
  %vm340 = vcmask 257024
  %341 = vst.msk [vmem:[%s6] sm:$0xf] %vm340, %v339
  // Predicated region
  $region26: #{noisy_dist_dueling_mlp.1} parent=0 // pred_check
    _
  $region27: #{noisy_dist_dueling_mlp.1} parent=0 // pred_check_branch
    %343 = sbr.rel (0) target = $region29
  $region28: #{noisy_dist_dueling_mlp.1} parent=0 // pred_region
    _
  $region29: #{noisy_dist_dueling_mlp.1} parent=0 // pred_fallthru
    _
  // Predicated region
  $region30: #{noisy_dist_dueling_mlp.1} parent=0 // pred_check
    _
  $region31: #{noisy_dist_dueling_mlp.1} parent=0 // pred_check_branch
    %345 = sbr.rel (0) target = $region33
  $region32: #{noisy_dist_dueling_mlp.1} parent=0 // pred_region
    _
  $region33: #{noisy_dist_dueling_mlp.1} parent=0 // pred_fallthru
    _

</llo_original>
